<compile_context>
chip_gen: v7x
topology: tpu7x:2x2x1
jax: 0.10.0
libtpu: 0.0.40
codegen_flags: <defaults>
</compile_context>

<pallas_src>
import jax
import jax.numpy as jnp
from jax.experimental import pallas as pl
from jax.experimental.pallas import tpu as pltpu

CARL_WEIGHT = 1.0  # self._weight in the PyTorch module

_CHUNK = 256    # rows per in-kernel strip-mined reduction step
_TM_MAX = 8192  # hard cap on rows per grid step


def _round_up(x, m):
    return ((x + m - 1) // m) * m


def _cdiv(a, b):
    return -(-a // b)


def _vmem_capacity_bytes():
    """Physical VMEM per TensorCore; conservative (v7x) fallback if unknown."""
    try:
        return int(pltpu.get_tpu_info().vmem_capacity_bytes)
    except Exception:
        return 64 << 20


def _plan_tiles(M, bytes_per_row, vmem_cap):
    """Pick (tm, chunk): rows per grid step and rows per in-kernel chunk.

    bytes_per_row = 128 * sum(itemsize over the 4 inputs) — the budget is
    therefore dtype-aware (bf16/u8 callers get larger tm for the same VMEM).
    """
    in_budget = int(vmem_cap * 0.6)               # double-buffered input blocks
    tm_cap = in_budget // (2 * bytes_per_row)
    tm_cap = max(256, min(tm_cap, _TM_MAX))
    if M <= tm_cap:
        tm = _round_up(M, 32)                     # 32-align: u8 sublane packing
        if tm > _CHUNK:
            tm = _round_up(M, _CHUNK)
    else:
        n_blocks = _cdiv(M, tm_cap)
        tm = _round_up(_cdiv(M, n_blocks), _CHUNK)  # minimize zero padding
    chunk = min(_CHUNK, tm)
    assert tm % chunk == 0
    return tm, chunk


def _make_kernel(tm, chunk, act_dtypes):
    n_chunks = tm // chunk
    # bf16 fast path: packed subtract/abs, widen to f32 only for mul/accumulate.
    lowp = all(jnp.dtype(d) == jnp.bfloat16 for d in act_dtypes)

    def kernel(pred_ref, cloudfree_ref, cloudy_ref, cloudmask_ref, out_ref, acc_ref):
        # Output-resident accumulator across the reduction (j) axis.
        @pl.when(pl.program_id(1) == 0)
        def _():
            out_ref[...] = jnp.zeros_like(out_ref)

        acc_ref[...] = jnp.zeros_like(acc_ref)

        @pl.loop(0, n_chunks)
        def _(c):
            off = pl.multiple_of(c * chunk, chunk)
            p = pred_ref[0, pl.ds(off, chunk), :]
            cf = cloudfree_ref[0, pl.ds(off, chunk), :]
            cy = cloudy_ref[0, pl.ds(off, chunk), :]
            m = cloudmask_ref[0, pl.ds(off, chunk), :].astype(jnp.float32)

            if lowp:
                a_cf = jnp.abs(p - cf).astype(jnp.float32)
                a_cy = jnp.abs(p - cy).astype(jnp.float32)
            else:
                pf = p.astype(jnp.float32)
                a_cf = jnp.abs(pf - cf.astype(jnp.float32))
                a_cy = jnp.abs(pf - cy.astype(jnp.float32))

            # (1-m)*|p-cy| + (m+w)*|p-cf|  ==  |p-cy| + w*|p-cf| + m*(|p-cf|-|p-cy|)
            if CARL_WEIGHT == 1.0:
                base = a_cy + a_cf
            else:
                base = a_cy + CARL_WEIGHT * a_cf
            acc_ref[...] += base + m * (a_cf - a_cy)

        # Single cross-sublane reduce per grid step; lane-dense (1,1,128) add.
        out_ref[...] += jnp.sum(acc_ref[...], axis=0)[None, None, :]

    return kernel


def carl_loss(pred_cloudfree, cloudfree, cloudy, cloudmask):
    """CARL loss. All inputs are NCHW [B, C, H, W] with identical shapes.

    Inputs may be float32, bfloat16, or (for the mask) uint8/bool — they are
    streamed in their native dtype and promoted to float32 inside the kernel.
    Arbitrary C*H*W is supported via exact zero padding.
    """
    B = pred_cloudfree.shape[0]
    n_per_sample = 1
    for d in pred_cloudfree.shape[1:]:
        n_per_sample *= int(d)

    M = _cdiv(n_per_sample, 128)
    dtypes = tuple(x.dtype for x in (pred_cloudfree, cloudfree, cloudy, cloudmask))
    bytes_per_row = 128 * sum(jnp.dtype(d).itemsize for d in dtypes)

    vmem_cap = _vmem_capacity_bytes()
    tm, chunk = _plan_tiles(M, bytes_per_row, vmem_cap)
    n_blocks = _cdiv(M, tm)
    m_pad = n_blocks * tm
    n_pad = m_pad * 128

    def to_tiles(x):
        flat = x.reshape(B, n_per_sample)
        if n_pad != n_per_sample:
            # Exact: zero elements contribute 0 to every term of the loss.
            flat = jnp.pad(flat, ((0, 0), (0, n_pad - n_per_sample)))
        return flat.reshape(B, m_pad, 128)

    inputs = [to_tiles(a) for a in (pred_cloudfree, cloudfree, cloudy, cloudmask)]

    in_spec = pl.BlockSpec((1, tm, 128), lambda b, j: (b, j, 0))
    out_spec = pl.BlockSpec((1, 1, 128), lambda b, j: (b, 0, 0))

    # Explicit, generation-correct VMEM limit: double-buffered inputs + headroom
    # (intermediates are chunk-sized thanks to the strip-mined reduction).
    in_bytes = 2 * tm * bytes_per_row
    vmem_limit = max(in_bytes + (8 << 20), 16 << 20)
    vmem_limit = min(vmem_limit, vmem_cap)

    kernel = _make_kernel(tm, chunk, dtypes[:3])

    partials = pl.pallas_call(
        kernel,
        out_shape=jax.ShapeDtypeStruct((B, 1, 128), jnp.float32),
        grid_spec=pltpu.PrefetchScalarGridSpec(
            num_scalar_prefetch=0,
            grid=(B, n_blocks),
            in_specs=[in_spec, in_spec, in_spec, in_spec],
            out_specs=out_spec,
            scratch_shapes=[pltpu.VMEM((chunk, 128), jnp.float32)],
        ),
        compiler_params=pltpu.CompilerParams(
            dimension_semantics=("parallel", "arbitrary"),
            vmem_limit_bytes=int(vmem_limit),
        ),
    )(*inputs)

    # Every per-sample mean shares the same denominator, so:
    #   mean_i(term_i) averaged over batch == sum(all terms) / (n_per_sample*B)
    return jnp.sum(partials) / (jnp.float32(n_per_sample) * jnp.float32(B))


def carl_loss_ref(pred_cloudfree, cloudfree, cloudy, cloudmask):
    """Pure-JAX reference mirroring the PyTorch per-sample loop."""
    B = pred_cloudfree.shape[0]
    loss = 0.0
    for i in range(B):
        p = pred_cloudfree[i].astype(jnp.float32)
        cf = cloudfree[i].astype(jnp.float32)
        cy = cloudy[i].astype(jnp.float32)
        m = cloudmask[i].astype(jnp.float32)
        clear = 1.0 - m
        loss = loss + (
            jnp.mean(clear * jnp.abs(p - cy) + m * jnp.abs(p - cf))
            + CARL_WEIGHT * jnp.mean(jnp.abs(p - cf))
        )
    return loss / B


if __name__ == "__main__":
    key = jax.random.PRNGKey(0)
    k1, k2, k3, k4 = jax.random.split(key, 4)

    # 1) float32 path (typical PyTorch usage).
    B, C, H, W = 2, 4, 16, 16
    pred_cloudfree = jax.random.normal(k1, (B, C, H, W), dtype=jnp.float32)
    cloudfree = jax.random.normal(k2, (B, C, H, W), dtype=jnp.float32)
    cloudy = jax.random.normal(k3, (B, C, H, W), dtype=jnp.float32)
    cloudmask = (jax.random.uniform(k4, (B, C, H, W)) > 0.5).astype(jnp.float32)

    out = jax.block_until_ready(carl_loss(pred_cloudfree, cloudfree, cloudy, cloudmask))
    ref = carl_loss_ref(pred_cloudfree, cloudfree, cloudy, cloudmask)
    assert jnp.allclose(out, ref, rtol=1e-5, atol=1e-5), (out, ref)

    # 2) Native low-precision path: bf16 activations + uint8 mask.
    out_lp = jax.block_until_ready(
        carl_loss(
            pred_cloudfree.astype(jnp.bfloat16),
            cloudfree.astype(jnp.bfloat16),
            cloudy.astype(jnp.bfloat16),
            cloudmask.astype(jnp.uint8),
        )
    )
    ref_lp = carl_loss_ref(
        pred_cloudfree.astype(jnp.bfloat16),
        cloudfree.astype(jnp.bfloat16),
        cloudy.astype(jnp.bfloat16),
        cloudmask.astype(jnp.uint8),
    )
    assert jnp.allclose(out_lp, ref_lp, rtol=2e-2, atol=2e-2), (out_lp, ref_lp)

    # 3) Awkward shape (C*H*W not a multiple of 128) — exercises zero padding.
    Bo, Co, Ho, Wo = 2, 3, 15, 15
    ka, kb, kc, kd = jax.random.split(jax.random.PRNGKey(1), 4)
    p_o = jax.random.normal(ka, (Bo, Co, Ho, Wo), dtype=jnp.float32)
    cf_o = jax.random.normal(kb, (Bo, Co, Ho, Wo), dtype=jnp.float32)
    cy_o = jax.random.normal(kc, (Bo, Co, Ho, Wo), dtype=jnp.float32)
    m_o = (jax.random.uniform(kd, (Bo, Co, Ho, Wo)) > 0.5).astype(jnp.float32)
    out_o = jax.block_until_ready(carl_loss(p_o, cf_o, cy_o, m_o))
    ref_o = carl_loss_ref(p_o, cf_o, cy_o, m_o)
    assert jnp.allclose(out_o, ref_o, rtol=1e-5, atol=1e-5), (out_o, ref_o)

    print("KERNEL_OK")
</pallas_src>

<mosaic_0001>
module attributes {stable_mosaic.version = 11 : i64} {
  func.func @kernel(%arg0: i32, %arg1: i32, %arg2: memref<1x32x128xf32, #tpu.memory_space<vmem>>, %arg3: memref<1x32x128xf32, #tpu.memory_space<vmem>>, %arg4: memref<1x32x128xf32, #tpu.memory_space<vmem>>, %arg5: memref<1x32x128xf32, #tpu.memory_space<vmem>>, %arg6: memref<1x1x128xf32, #tpu.memory_space<vmem>>, %arg7: memref<32x128xf32, #tpu.memory_space<vmem>>) attributes {dimension_semantics = [#tpu.dimension_semantics<parallel>, #tpu.dimension_semantics<arbitrary>], iteration_bounds = array<i64: 2, 1>, scalar_prefetch = 0 : i64, scratch_operands = 1 : i64, tpu.core_type = #tpu.core_type<tc>, window_params = [{transform_indices = @transform_0, window_bounds = array<i64: 1, 32, 128>}, {transform_indices = @transform_1, window_bounds = array<i64: 1, 32, 128>}, {transform_indices = @transform_2, window_bounds = array<i64: 1, 32, 128>}, {transform_indices = @transform_3, window_bounds = array<i64: 1, 32, 128>}, {transform_indices = @transform_4, window_bounds = array<i64: 1, 1, 128>}]} {
    %c0_i32 = arith.constant 0 : i32
    %0 = arith.cmpi eq, %arg1, %c0_i32 : i32
    %1 = arith.extui %0 : i1 to i32
    %c0_i32_0 = arith.constant 0 : i32
    %2 = arith.cmpi ne, %1, %c0_i32_0 : i32
    scf.if %2 {
      %cst_26 = arith.constant 0.000000e+00 : f32
      %38 = vector.broadcast %cst_26 : f32 to vector<1x1x128xf32>
      %c0_27 = arith.constant 0 : index
      %c0_28 = arith.constant 0 : index
      %c0_29 = arith.constant 0 : index
      %39 = vector.load %arg6[%c0_27, %c0_28, %c0_29] : memref<1x1x128xf32, #tpu.memory_space<vmem>>, vector<1x1x128xf32>
      tpu.vector_store %arg6[%c0_27, %c0_28, %c0_29], %38 {strides = array<i32>} : memref<1x1x128xf32, #tpu.memory_space<vmem>>, vector<1x1x128xf32>,
    } else {
    }
    %cst = arith.constant 0.000000e+00 : f32
    %3 = vector.broadcast %cst : f32 to vector<32x128xf32>
    %c0 = arith.constant 0 : index
    %c0_1 = arith.constant 0 : index
    %4 = vector.load %arg7[%c0, %c0_1] : memref<32x128xf32, #tpu.memory_space<vmem>>, vector<32x128xf32>
    tpu.vector_store %arg7[%c0, %c0_1], %3 {strides = array<i32>} : memref<32x128xf32, #tpu.memory_space<vmem>>, vector<32x128xf32>,
    %c0_i32_2 = arith.constant 0 : i32
    %c1_i32 = arith.constant 1 : i32
    %5 = arith.muli %c0_i32_2, %c1_i32 : i32
    %c0_i32_3 = arith.constant 0 : i32
    %6 = arith.addi %c0_i32_3, %5 : i32
    %c32_i32 = arith.constant 32 : i32
    %7 = arith.muli %6, %c32_i32 : i32
    %8 = tpu.assume_multiple %7, 32 : i32
    %c0_4 = arith.constant 0 : index
    %9 = arith.index_cast %8 : i32 to index
    %c0_5 = arith.constant 0 : index
    %10 = vector.load %arg2[%c0_4, %9, %c0_5] : memref<1x32x128xf32, #tpu.memory_space<vmem>>, vector<1x32x128xf32>
    %11 = vector.shape_cast %10 : vector<1x32x128xf32> to vector<32x128xf32>
    %c0_6 = arith.constant 0 : index
    %12 = arith.index_cast %8 : i32 to index
    %c0_7 = arith.constant 0 : index
    %13 = vector.load %arg3[%c0_6, %12, %c0_7] : memref<1x32x128xf32, #tpu.memory_space<vmem>>, vector<1x32x128xf32>
    %14 = vector.shape_cast %13 : vector<1x32x128xf32> to vector<32x128xf32>
    %c0_8 = arith.constant 0 : index
    %15 = arith.index_cast %8 : i32 to index
    %c0_9 = arith.constant 0 : index
    %16 = vector.load %arg4[%c0_8, %15, %c0_9] : memref<1x32x128xf32, #tpu.memory_space<vmem>>, vector<1x32x128xf32>
    %17 = vector.shape_cast %16 : vector<1x32x128xf32> to vector<32x128xf32>
    %c0_10 = arith.constant 0 : index
    %18 = arith.index_cast %8 : i32 to index
    %c0_11 = arith.constant 0 : index
    %19 = vector.load %arg5[%c0_10, %18, %c0_11] : memref<1x32x128xf32, #tpu.memory_space<vmem>>, vector<1x32x128xf32>
    %20 = vector.shape_cast %19 : vector<1x32x128xf32> to vector<32x128xf32>
    %21 = arith.subf %11, %14 : vector<32x128xf32>
    %22 = math.absf %21 : vector<32x128xf32>
    %23 = arith.subf %11, %17 : vector<32x128xf32>
    %24 = math.absf %23 : vector<32x128xf32>
    %25 = arith.addf %24, %22 : vector<32x128xf32>
    %c0_12 = arith.constant 0 : index
    %c0_13 = arith.constant 0 : index
    %26 = vector.load %arg7[%c0_12, %c0_13] : memref<32x128xf32, #tpu.memory_space<vmem>>, vector<32x128xf32>
    %27 = arith.subf %22, %24 : vector<32x128xf32>
    %28 = arith.mulf %20, %27 : vector<32x128xf32>
    %29 = arith.addf %25, %28 : vector<32x128xf32>
    %30 = arith.addf %26, %29 : vector<32x128xf32>
    %c0_14 = arith.constant 0 : index
    %c0_15 = arith.constant 0 : index
    %31 = vector.load %arg7[%c0_14, %c0_15] : memref<32x128xf32, #tpu.memory_space<vmem>>, vector<32x128xf32>
    tpu.vector_store %arg7[%c0_14, %c0_15], %30 {strides = array<i32>} : memref<32x128xf32, #tpu.memory_space<vmem>>, vector<32x128xf32>,
    %c1_i32_16 = arith.constant 1 : i32
    %c0_17 = arith.constant 0 : index
    %c0_18 = arith.constant 0 : index
    %c0_19 = arith.constant 0 : index
    %32 = vector.load %arg6[%c0_17, %c0_18, %c0_19] : memref<1x1x128xf32, #tpu.memory_space<vmem>>, vector<1x1x128xf32>
    %c0_20 = arith.constant 0 : index
    %c0_21 = arith.constant 0 : index
    %33 = vector.load %arg7[%c0_20, %c0_21] : memref<32x128xf32, #tpu.memory_space<vmem>>, vector<32x128xf32>
    %cst_22 = arith.constant dense<0.000000e+00> : vector<128xf32>
    %34 = vector.multi_reduction <add>, %33, %cst_22 [0] : vector<32x128xf32> to vector<128xf32>
    %35 = vector.shape_cast %34 : vector<128xf32> to vector<1x1x128xf32>
    %36 = arith.addf %32, %35 : vector<1x1x128xf32>
    %c0_23 = arith.constant 0 : index
    %c0_24 = arith.constant 0 : index
    %c0_25 = arith.constant 0 : index
    %37 = vector.load %arg6[%c0_23, %c0_24, %c0_25] : memref<1x1x128xf32, #tpu.memory_space<vmem>>, vector<1x1x128xf32>
    tpu.vector_store %arg6[%c0_23, %c0_24, %c0_25], %36 {strides = array<i32>} : memref<1x1x128xf32, #tpu.memory_space<vmem>>, vector<1x1x128xf32>,
    return
  }
  func.func @transform_0(%arg0: i32, %arg1: i32) -> (i32, i32, i32) {
    %c0_i32 = arith.constant 0 : i32
    %c0_i32_0 = arith.constant 0 : i32
    return %arg0, %arg1, %c0_i32 : i32, i32, i32
  }
  func.func @transform_1(%arg0: i32, %arg1: i32) -> (i32, i32, i32) {
    %c0_i32 = arith.constant 0 : i32
    %c0_i32_0 = arith.constant 0 : i32
    return %arg0, %arg1, %c0_i32 : i32, i32, i32
  }
  func.func @transform_2(%arg0: i32, %arg1: i32) -> (i32, i32, i32) {
    %c0_i32 = arith.constant 0 : i32
    %c0_i32_0 = arith.constant 0 : i32
    return %arg0, %arg1, %c0_i32 : i32, i32, i32
  }
  func.func @transform_3(%arg0: i32, %arg1: i32) -> (i32, i32, i32) {
    %c0_i32 = arith.constant 0 : i32
    %c0_i32_0 = arith.constant 0 : i32
    return %arg0, %arg1, %c0_i32 : i32, i32, i32
  }
  func.func @transform_4(%arg0: i32, %arg1: i32) -> (i32, i32, i32) {
    %c0_i32 = arith.constant 0 : i32
    %c0_i32_0 = arith.constant 0 : i32
    %c0_i32_1 = arith.constant 0 : i32
    return %arg0, %c0_i32, %c0_i32_0 : i32, i32, i32
  }
}

</mosaic_0001>

<llo_original>
// kernel: tpu_custom_call.1
$region0: #{tpu_custom_call.1}
  #allocation0 [shape = 'u32[]', space=smem, size = 0x4, offset = 0x4, fixed_abs, tag = 'smem constant byte address 0x4 - core index']
  #allocation1 [shape = 'u32[144,128]{1,0:T(1,128)}', space=vmem, size = 0x12000, scoped, tag = 'internal scratch']
  #allocation2 [shape = 'f32[32,128]{1,0:T(8,128)}', space=vmem, size = 0x4000, scoped, tag = 'scratch operand']
  %s0 = inlined_call_operand.hbm [shape: f32[2,32,128], index: 0, kind: input, shape index: {}]
  %s1 = inlined_call_operand.hbm [shape: f32[2,32,128], index: 1, kind: input, shape index: {}]
  %s2 = inlined_call_operand.hbm [shape: f32[2,32,128], index: 2, kind: input, shape index: {}]
  %s3 = inlined_call_operand.hbm [shape: f32[2,32,128], index: 3, kind: input, shape index: {}]
  %s4 = inlined_call_operand.hbm [shape: f32[2,1,128], index: 4, kind: output, shape index: {}]
  %s5 = sld [smem:[#allocation0]]
  $region69: #{tpu_custom_call.1} parent=0
    _
  %s7 = ssub.s32 1, %s5
  %s8 = scalar_select 0, %s7, %s5
  $region1: #{tpu_custom_call.1} parent=0
    #allocation3 [shape = 'u8[32768]{0}', space=vmem, size = 0x8000, scoped, tag = 'input window, operand 0']
    #allocation4 [shape = 's32[2]{0}', space=sflag, size = 0x8, scoped, tag = 'scoped memory for tpu_custom_call.1']
    #allocation5 [shape = 's32[2]{0}', space=sflag, size = 0x8, scoped, tag = 'scoped memory for tpu_custom_call.1']
    #allocation6 [shape = 'u8[32768]{0}', space=vmem, size = 0x8000, scoped, tag = 'input window, operand 1']
    #allocation7 [shape = 's32[2]{0}', space=sflag, size = 0x8, scoped, tag = 'scoped memory for tpu_custom_call.1']
    #allocation8 [shape = 'u8[32768]{0}', space=vmem, size = 0x8000, scoped, tag = 'input window, operand 2']
    #allocation9 [shape = 'u8[32768]{0}', space=vmem, size = 0x8000, scoped, tag = 'input window, operand 3']
    #allocation10 [shape = 's32[2]{0}', space=sflag, size = 0x8, scoped, tag = 'scoped memory for tpu_custom_call.1']
    #allocation11 [shape = 'u8[1024]{0}', space=vmem, size = 0x400, scoped, tag = 'output window, operand 0']
    %9 = vsyncpa [#allocation4], 0
    %s10 = scalar_lea.sflag [#allocation4], 1
    %11 = vsyncpa %s10, 0
    %12 = vsyncpa [#allocation7], 0
    %s13 = scalar_lea.sflag [#allocation7], 1
    %14 = vsyncpa %s13, 0
    %15 = vsyncpa [#allocation10], 0
    %s16 = scalar_lea.sflag [#allocation10], 1
    %17 = vsyncpa %s16, 0
    %18 = vsyncpa [#allocation5], 0
    %s19 = scalar_lea.sflag [#allocation5], 1
    %20 = vsyncpa %s19, 0
    loop: start=0, step=1, limit=4
    $region2: #{tpu_custom_call.1} parent=1 // loop_pre_header
      _
    $region3: #{tpu_custom_call.1} parent=1 // loop_header
      %s22 = sphi 0, %s26
      %p23 = scmp.ge.s32.totalorder %s22, 4
      %s29 = sphi 0, %s41
      %s30 = sphi 0, %s37
      %s31 = sphi 0, %s29
      %s32 = sphi 0, %s30
      %s33 = sphi 0, %s31
      %s34 = sphi 0, %s32
      %s46 = sphi 0, %s48
      %s49 = sphi 0, %s46
      %s50 = sphi 0, %s49
      %s66 = sphi 0, %s50
      %s74 = sphi 0, %s76
      %s77 = sphi 0, %s74
      %s78 = sphi 0, %s77
      %s94 = sphi 0, %s78
      %s102 = sphi 0, %s104
      %s105 = sphi 0, %s102
      %s106 = sphi 0, %s105
      %s122 = sphi 0, %s106
      %s130 = sphi 0, %s132
      %s133 = sphi 0, %s130
      %s134 = sphi 0, %s133
      %s150 = sphi 0, %s134
      %s156 = sphi 0, %s158
      %s159 = sphi 0, %s156
      %s160 = sphi 0, %s159
      %s176 = sphi 0, %s160
    $region4: #{tpu_custom_call.1} parent=1 // loop_header_branch
      %25 = sbr.rel (%p23) target = $region8
    $region5: #{tpu_custom_call.1} parent=1 // loop_body
      %s27 = ssub.s32 %s22, 1
      %s28 = ssub.s32 %s22, 2
      %s35 = sadd.s32 1, %s30
      %p36 = scmp.ge.s32.totalorder %s35, 1
      %s37 = scalar_select %p36, 0, %s35
      %s38 = sadd.s32 1, %s29
      %s39 = scalar_select %p36, %s38, %s29
      %p40 = scmp.ge.s32.totalorder %s39, 2
      %s41 = scalar_select %p40, 0, %s39
      %s42 = ssub.s32 %s29, %s41
      %s43 = ssub.s32 %s30, %s37
      %s44 = sor.u32 %s42, %s43
      %p45 = scmp.eq.s32.totalorder %s44, 0
      %s47 = sadd.s32 %s46, 1
      %s48 = scalar_select %p45, %s46, %s47
      %p51 = pneg %p45
      %p52 = scmp.eq.s32.totalorder %s22, 1
      %p53 = por %p51, %p52
      %p54 = scmp.ne.s32.totalorder %s46, %s49
      %p55 = scmp.eq.s32.totalorder %s22, 0
      %p56 = por %p54, %p55
      %p57 = scmp.ne.s32.totalorder %s46, %s49
      %p58 = scmp.eq.s32.totalorder %s27, 1
      %p59 = por %p57, %p58
      %p60 = scmp.ne.s32.totalorder %s49, %s50
      %p61 = scmp.eq.s32.totalorder %s27, 0
      %p62 = por %p60, %p61
      %p63 = scmp.ne.s32.totalorder %s49, %s50
      %p64 = scmp.eq.s32.totalorder %s28, 1
      %p65 = por %p63, %p64
      %p67 = scmp.ne.s32.totalorder %s50, %s66
      %p68 = scmp.eq.s32.totalorder %s28, 0
      %p69 = por %p67, %p68
      %s70 = ssub.s32 %s29, %s41
      %s71 = ssub.s32 %s30, %s37
      %s72 = sor.u32 %s70, %s71
      %p73 = scmp.eq.s32.totalorder %s72, 0
      %s75 = sadd.s32 %s74, 1
      %s76 = scalar_select %p73, %s74, %s75
      %p79 = pneg %p73
      %p80 = scmp.eq.s32.totalorder %s22, 1
      %p81 = por %p79, %p80
      %p82 = scmp.ne.s32.totalorder %s74, %s77
      %p83 = scmp.eq.s32.totalorder %s22, 0
      %p84 = por %p82, %p83
      %p85 = scmp.ne.s32.totalorder %s74, %s77
      %p86 = scmp.eq.s32.totalorder %s27, 1
      %p87 = por %p85, %p86
      %p88 = scmp.ne.s32.totalorder %s77, %s78
      %p89 = scmp.eq.s32.totalorder %s27, 0
      %p90 = por %p88, %p89
      %p91 = scmp.ne.s32.totalorder %s77, %s78
      %p92 = scmp.eq.s32.totalorder %s28, 1
      %p93 = por %p91, %p92
      %p95 = scmp.ne.s32.totalorder %s78, %s94
      %p96 = scmp.eq.s32.totalorder %s28, 0
      %p97 = por %p95, %p96
      %s98 = ssub.s32 %s29, %s41
      %s99 = ssub.s32 %s30, %s37
      %s100 = sor.u32 %s98, %s99
      %p101 = scmp.eq.s32.totalorder %s100, 0
      %s103 = sadd.s32 %s102, 1
      %s104 = scalar_select %p101, %s102, %s103
      %p107 = pneg %p101
      %p108 = scmp.eq.s32.totalorder %s22, 1
      %p109 = por %p107, %p108
      %p110 = scmp.ne.s32.totalorder %s102, %s105
      %p111 = scmp.eq.s32.totalorder %s22, 0
      %p112 = por %p110, %p111
      %p113 = scmp.ne.s32.totalorder %s102, %s105
      %p114 = scmp.eq.s32.totalorder %s27, 1
      %p115 = por %p113, %p114
      %p116 = scmp.ne.s32.totalorder %s105, %s106
      %p117 = scmp.eq.s32.totalorder %s27, 0
      %p118 = por %p116, %p117
      %p119 = scmp.ne.s32.totalorder %s105, %s106
      %p120 = scmp.eq.s32.totalorder %s28, 1
      %p121 = por %p119, %p120
      %p123 = scmp.ne.s32.totalorder %s106, %s122
      %p124 = scmp.eq.s32.totalorder %s28, 0
      %p125 = por %p123, %p124
      %s126 = ssub.s32 %s29, %s41
      %s127 = ssub.s32 %s30, %s37
      %s128 = sor.u32 %s126, %s127
      %p129 = scmp.eq.s32.totalorder %s128, 0
      %s131 = sadd.s32 %s130, 1
      %s132 = scalar_select %p129, %s130, %s131
      %p135 = pneg %p129
      %p136 = scmp.eq.s32.totalorder %s22, 1
      %p137 = por %p135, %p136
      %p138 = scmp.ne.s32.totalorder %s130, %s133
      %p139 = scmp.eq.s32.totalorder %s22, 0
      %p140 = por %p138, %p139
      %p141 = scmp.ne.s32.totalorder %s130, %s133
      %p142 = scmp.eq.s32.totalorder %s27, 1
      %p143 = por %p141, %p142
      %p144 = scmp.ne.s32.totalorder %s133, %s134
      %p145 = scmp.eq.s32.totalorder %s27, 0
      %p146 = por %p144, %p145
      %p147 = scmp.ne.s32.totalorder %s133, %s134
      %p148 = scmp.eq.s32.totalorder %s28, 1
      %p149 = por %p147, %p148
      %p151 = scmp.ne.s32.totalorder %s134, %s150
      %p152 = scmp.eq.s32.totalorder %s28, 0
      %p153 = por %p151, %p152
      %s154 = ssub.s32 %s29, %s41
      %p155 = scmp.eq.s32.totalorder %s154, 0
      %s157 = sadd.s32 %s156, 1
      %s158 = scalar_select %p155, %s156, %s157
      %p161 = pneg %p155
      %p162 = scmp.eq.s32.totalorder %s22, 1
      %p163 = por %p161, %p162
      %p164 = scmp.ne.s32.totalorder %s156, %s159
      %p165 = scmp.eq.s32.totalorder %s22, 0
      %p166 = por %p164, %p165
      %p167 = scmp.ne.s32.totalorder %s156, %s159
      %p168 = scmp.eq.s32.totalorder %s27, 1
      %p169 = por %p167, %p168
      %p170 = scmp.ne.s32.totalorder %s159, %s160
      %p171 = scmp.eq.s32.totalorder %s27, 0
      %p172 = por %p170, %p171
      %p173 = scmp.ne.s32.totalorder %s159, %s160
      %p174 = scmp.eq.s32.totalorder %s28, 1
      %p175 = por %p173, %p174
      %p177 = scmp.ne.s32.totalorder %s160, %s176
      %p178 = scmp.eq.s32.totalorder %s28, 0
      %p179 = por %p177, %p178
      %p180 = scmp.le.s32.totalorder 1, %s22
      %p181 = scmp.lt.s32.totalorder %s22, 3
      %p182 = pnand %p180, %p181
      %p183 = pneg %p182
      // Predicated region
      $region9: #{tpu_custom_call.1} parent=5 // pred_check
        _
      $region10: #{tpu_custom_call.1} parent=5 // pred_check_branch
        %185 = sbr.rel (%p182) target = $region12
      $region11: #{tpu_custom_call.1} parent=5 // pred_region
        %s186 = ssub.s32 %s22, 1
      $region12: #{tpu_custom_call.1} parent=5 // pred_fallthru
        _
      %p187 = scmp.lt.s32.totalorder %s22, 2
      // Predicated region
      $region13: #{tpu_custom_call.1} parent=5 // pred_check
        %p188 = pneg %p187
      $region14: #{tpu_custom_call.1} parent=5 // pred_check_branch
        %190 = sbr.rel (%p188) target = $region16
      $region15: #{tpu_custom_call.1} parent=5 // pred_region
        // Predicated region
        $region17: #{tpu_custom_call.1} parent=15 // pred_check
          %p191 = pneg %p56
        $region18: #{tpu_custom_call.1} parent=15 // pred_check_branch
          %193 = sbr.rel (%p191) target = $region20
        $region19: #{tpu_custom_call.1} parent=15 // pred_region
          %s194 = sand.u32 %s46, 1
          %s195 = scalar_lea.sflag [#allocation4], %s194
          %s196 = sand.u32 %s46, 1
          %s197 = smul.addr %s196, 32
          %s198 = scalar_lea.vmem [#allocation3], %s197
          %s199 = smul.u32 4, %s30
          %s201 = ssub.s32 512, 512
          %202 = vsyncadd %s195, %s201
          %s203 = smul.addr %s29, 4
          %s204 = sadd.s32 %s199, %s203
          %s205 = smul.addr %s204, 128
          %s206 = scalar_lea.hbm %s0, %s205
          %s207 = sshll.u32 %s198, 4
          %s208 = int_to_ptr.vmem [resolvable:$true] %s207
          %213 = dma.hbm_to_vmem [thread:$0]  %s206, 512, %s208, %s195, 128, 128, 8
        $region20: #{tpu_custom_call.1} parent=15 // pred_fallthru
          _
        // Predicated region
        $region21: #{tpu_custom_call.1} parent=15 // pred_check
          %p214 = pneg %p84
        $region22: #{tpu_custom_call.1} parent=15 // pred_check_branch
          %216 = sbr.rel (%p214) target = $region24
        $region23: #{tpu_custom_call.1} parent=15 // pred_region
          %s217 = sand.u32 %s22, 1
          %s218 = scalar_lea.sflag [#allocation7], %s217
          %s219 = sand.u32 %s74, 1
          %s220 = smul.addr %s219, 32
          %s221 = scalar_lea.vmem [#allocation6], %s220
          %s222 = smul.u32 4, %s30
          %s224 = ssub.s32 512, 512
          %225 = vsyncadd %s218, %s224
          %s226 = smul.addr %s29, 4
          %s227 = sadd.s32 %s222, %s226
          %s228 = smul.addr %s227, 128
          %s229 = scalar_lea.hbm %s1, %s228
          %s230 = sshll.u32 %s221, 4
          %s231 = int_to_ptr.vmem [resolvable:$true] %s230
          %236 = dma.hbm_to_vmem [thread:$0]  %s229, 512, %s231, %s218, 128, 128, 8
        $region24: #{tpu_custom_call.1} parent=15 // pred_fallthru
          _
        // Predicated region
        $region25: #{tpu_custom_call.1} parent=15 // pred_check
          %p237 = pneg %p112
        $region26: #{tpu_custom_call.1} parent=15 // pred_check_branch
          %239 = sbr.rel (%p237) target = $region28
        $region27: #{tpu_custom_call.1} parent=15 // pred_region
          %s240 = sand.u32 %s22, 1
          %s241 = scalar_lea.sflag [#allocation7], %s240
          %s242 = sand.u32 %s102, 1
          %s243 = smul.addr %s242, 32
          %s244 = scalar_lea.vmem [#allocation8], %s243
          %s245 = smul.u32 4, %s30
          %s247 = ssub.s32 512, 512
          %248 = vsyncadd %s241, %s247
          %s249 = smul.addr %s29, 4
          %s250 = sadd.s32 %s245, %s249
          %s251 = smul.addr %s250, 128
          %s252 = scalar_lea.hbm %s2, %s251
          %s253 = sshll.u32 %s244, 4
          %s254 = int_to_ptr.vmem [resolvable:$true] %s253
          %259 = dma.hbm_to_vmem [thread:$0]  %s252, 512, %s254, %s241, 128, 128, 8
        $region28: #{tpu_custom_call.1} parent=15 // pred_fallthru
          _
        // Predicated region
        $region29: #{tpu_custom_call.1} parent=15 // pred_check
          %p260 = pneg %p140
        $region30: #{tpu_custom_call.1} parent=15 // pred_check_branch
          %262 = sbr.rel (%p260) target = $region32
        $region31: #{tpu_custom_call.1} parent=15 // pred_region
          %s263 = sand.u32 %s130, 1
          %s264 = scalar_lea.sflag [#allocation10], %s263
          %s265 = sand.u32 %s130, 1
          %s266 = smul.addr %s265, 32
          %s267 = scalar_lea.vmem [#allocation9], %s266
          %s268 = smul.u32 4, %s30
          %s270 = ssub.s32 512, 512
          %271 = vsyncadd %s264, %s270
          %s272 = smul.addr %s29, 4
          %s273 = sadd.s32 %s268, %s272
          %s274 = smul.addr %s273, 128
          %s275 = scalar_lea.hbm %s3, %s274
          %s276 = sshll.u32 %s267, 4
          %s277 = int_to_ptr.vmem [resolvable:$true] %s276
          %282 = dma.hbm_to_vmem [thread:$0]  %s275, 512, %s277, %s264, 128, 128, 8
        $region32: #{tpu_custom_call.1} parent=15 // pred_fallthru
          _
      $region16: #{tpu_custom_call.1} parent=5 // pred_fallthru
        _
      %p283 = scmp.le.s32.totalorder 1, %s22
      %p284 = scmp.lt.s32.totalorder %s22, 3
      %p285 = pnand %p283, %p284
      %p286 = pneg %p285
      // Predicated region
      $region33: #{tpu_custom_call.1} parent=5 // pred_check
        _
      $region34: #{tpu_custom_call.1} parent=5 // pred_check_branch
        %288 = sbr.rel (%p285) target = $region36
      $region35: #{tpu_custom_call.1} parent=5 // pred_region
        %s289 = ssub.s32 %s22, 1
        %s290 = sand.u32 %s49, 1
        %s291 = scalar_lea.sflag [#allocation4], %s290
        %s292 = sand.u32 %s49, 1
        %s293 = smul.addr %s292, 32
        %s294 = scalar_lea.vmem [#allocation3], %s293
        // Predicated region
        $region37: #{tpu_custom_call.1} parent=35 // pred_check
          %p295 = pneg %p62
        $region38: #{tpu_custom_call.1} parent=35 // pred_check_branch
          %297 = sbr.rel (%p295) target = $region40
        $region39: #{tpu_custom_call.1} parent=35 // pred_region
          %298 = dma.done %s291, 512
        $region40: #{tpu_custom_call.1} parent=35 // pred_fallthru
          _
        %s299 = sand.u32 %s27, 1
        %s300 = scalar_lea.sflag [#allocation7], %s299
        %s301 = sand.u32 %s77, 1
        %s302 = smul.addr %s301, 32
        %s303 = scalar_lea.vmem [#allocation6], %s302
        // Predicated region
        $region41: #{tpu_custom_call.1} parent=35 // pred_check
          %p304 = pneg %p90
        $region42: #{tpu_custom_call.1} parent=35 // pred_check_branch
          %306 = sbr.rel (%p304) target = $region44
        $region43: #{tpu_custom_call.1} parent=35 // pred_region
          %307 = dma.done %s300, 512
        $region44: #{tpu_custom_call.1} parent=35 // pred_fallthru
          _
        %s308 = sand.u32 %s27, 1
        %s309 = scalar_lea.sflag [#allocation7], %s308
        %s310 = sand.u32 %s105, 1
        %s311 = smul.addr %s310, 32
        %s312 = scalar_lea.vmem [#allocation8], %s311
        // Predicated region
        $region45: #{tpu_custom_call.1} parent=35 // pred_check
          %p313 = pneg %p118
        $region46: #{tpu_custom_call.1} parent=35 // pred_check_branch
          %315 = sbr.rel (%p313) target = $region48
        $region47: #{tpu_custom_call.1} parent=35 // pred_region
          %316 = dma.done %s309, 512
        $region48: #{tpu_custom_call.1} parent=35 // pred_fallthru
          _
        %s317 = sand.u32 %s133, 1
        %s318 = scalar_lea.sflag [#allocation10], %s317
        %s319 = sand.u32 %s133, 1
        %s320 = smul.addr %s319, 32
        %s321 = scalar_lea.vmem [#allocation9], %s320
        // Predicated region
        $region49: #{tpu_custom_call.1} parent=35 // pred_check
          %p322 = pneg %p146
        $region50: #{tpu_custom_call.1} parent=35 // pred_check_branch
          %324 = sbr.rel (%p322) target = $region52
        $region51: #{tpu_custom_call.1} parent=35 // pred_region
          %325 = dma.done %s318, 512
        $region52: #{tpu_custom_call.1} parent=35 // pred_fallthru
          _
        %s326 = sand.u32 %s49, 1
        %s327 = scalar_lea.sflag [#allocation4], %s326
        %s328 = sand.u32 %s49, 1
        %s329 = smul.addr %s328, 32
        %s330 = scalar_lea.vmem [#allocation3], %s329
        %p331 = pneg %p62
        %p332 = pneg %p59
        %s333 = sand.u32 %s27, 1
        %s334 = scalar_lea.sflag [#allocation7], %s333
        %s335 = sand.u32 %s77, 1
        %s336 = smul.addr %s335, 32
        %s337 = scalar_lea.vmem [#allocation6], %s336
        %p338 = pneg %p90
        %p339 = pneg %p87
        %s340 = sand.u32 %s27, 1
        %s341 = scalar_lea.sflag [#allocation7], %s340
        %s342 = sand.u32 %s105, 1
        %s343 = smul.addr %s342, 32
        %s344 = scalar_lea.vmem [#allocation8], %s343
        %p345 = pneg %p118
        %p346 = pneg %p115
        %s347 = sand.u32 %s133, 1
        %s348 = scalar_lea.sflag [#allocation10], %s347
        %s349 = sand.u32 %s133, 1
        %s350 = smul.addr %s349, 32
        %s351 = scalar_lea.vmem [#allocation9], %s350
        %p352 = pneg %p146
        %p353 = pneg %p143
        %p354 = pneg %p172
        %p355 = pneg %p169
        %s356 = sand.u32 %s159, 1
        %s357 = scalar_lea.sflag [#allocation5], %s356
        %s358 = sand.u32 %s159, 1
        %s359 = scalar_lea.vmem [#allocation11], %s358
        %s360 = smul.u32 4, %s32
        %s361 = smul.u32 4, %s32
        %s362 = smul.u32 4, %s32
        %s363 = smul.u32 4, %s32
        %p364 = scmp.eq.s32.totalorder %s32, 0
        // Predicated region
        $region53: #{tpu_custom_call.1} parent=35 // pred_check
          %p365 = pneg %p364
        $region54: #{tpu_custom_call.1} parent=35 // pred_check_branch
          %367 = sbr.rel (%p365) target = $region56
        $region55: #{tpu_custom_call.1} parent=35 // pred_region
          %368 = vst [vmem:[%s359] sm:$0x1] 0.0
        $region56: #{tpu_custom_call.1} parent=35 // pred_fallthru
          _
        %369 = vst [vmem:[#allocation2] sm:$0xff] 0.0
        %370 = vst [vmem:[#allocation2 + $0x8] sm:$0xff] 0.0
        %371 = vst [vmem:[#allocation2 + $0x10] sm:$0xff] 0.0
        %372 = vst [vmem:[#allocation2 + $0x18] sm:$0xff] 0.0
        %v373 = vld [vmem:[%s294] sm:$0xff]
        %v374 = vld [vmem:[%s294 + $0x8] sm:$0xff]
        %v375 = vld [vmem:[%s294 + $0x10] sm:$0xff]
        %v376 = vld [vmem:[%s294 + $0x18] sm:$0xff]
        %v377 = vld [vmem:[%s303] sm:$0xff]
        %v378 = vld [vmem:[%s303 + $0x8] sm:$0xff]
        %v379 = vld [vmem:[%s303 + $0x10] sm:$0xff]
        %v380 = vld [vmem:[%s303 + $0x18] sm:$0xff]
        %v381 = vld [vmem:[%s312] sm:$0xff]
        %v382 = vld [vmem:[%s312 + $0x8] sm:$0xff]
        %v383 = vld [vmem:[%s312 + $0x10] sm:$0xff]
        %v384 = vld [vmem:[%s312 + $0x18] sm:$0xff]
        %v385 = vld [vmem:[%s321] sm:$0xff]
        %v386 = vld [vmem:[%s321 + $0x8] sm:$0xff]
        %v387 = vld [vmem:[%s321 + $0x10] sm:$0xff]
        %v388 = vld [vmem:[%s321 + $0x18] sm:$0xff]
        %v389 = vsub.f32 %v373, %v377
        %v390 = vsub.f32 %v374, %v378
        %v391 = vsub.f32 %v375, %v379
        %v392 = vsub.f32 %v376, %v380
        %v393 = vand.u32 2147483647, %v389
        %v394 = vand.u32 2147483647, %v390
        %v395 = vand.u32 2147483647, %v391
        %v396 = vand.u32 2147483647, %v392
        %v397 = vsub.f32 %v373, %v381
        %v398 = vsub.f32 %v374, %v382
        %v399 = vsub.f32 %v375, %v383
        %v400 = vsub.f32 %v376, %v384
        %v401 = vand.u32 2147483647, %v397
        %v402 = vand.u32 2147483647, %v398
        %v403 = vand.u32 2147483647, %v399
        %v404 = vand.u32 2147483647, %v400
        %v405 = vadd.f32 %v401, %v393
        %v406 = vadd.f32 %v402, %v394
        %v407 = vadd.f32 %v403, %v395
        %v408 = vadd.f32 %v404, %v396
        %v409 = vld [vmem:[#allocation2] sm:$0xff]
        %v410 = vld [vmem:[#allocation2 + $0x8] sm:$0xff]
        %v411 = vld [vmem:[#allocation2 + $0x10] sm:$0xff]
        %v412 = vld [vmem:[#allocation2 + $0x18] sm:$0xff]
        %v413 = vsub.f32 %v393, %v401
        %v414 = vsub.f32 %v394, %v402
        %v415 = vsub.f32 %v395, %v403
        %v416 = vsub.f32 %v396, %v404
        %v417 = vmul.f32 %v385, %v413
        %v418 = vmul.f32 %v386, %v414
        %v419 = vmul.f32 %v387, %v415
        %v420 = vmul.f32 %v388, %v416
        %v421 = vadd.f32 %v405, %v417
        %v422 = vadd.f32 %v406, %v418
        %v423 = vadd.f32 %v407, %v419
        %v424 = vadd.f32 %v408, %v420
        %v425 = vadd.f32 %v409, %v421
        %v426 = vadd.f32 %v410, %v422
        %v427 = vadd.f32 %v411, %v423
        %v428 = vadd.f32 %v412, %v424
        %429 = vst [vmem:[#allocation2] sm:$0xff] %v425
        %430 = vst [vmem:[#allocation2 + $0x8] sm:$0xff] %v426
        %431 = vst [vmem:[#allocation2 + $0x10] sm:$0xff] %v427
        %432 = vst [vmem:[#allocation2 + $0x18] sm:$0xff] %v428
        %v433 = vld [vmem:[%s359] sm:$0x1]
        %v434 = vld [vmem:[#allocation2] sm:$0xff]
        %v435 = vld [vmem:[#allocation2 + $0x8] sm:$0xff]
        %v436 = vld [vmem:[#allocation2 + $0x10] sm:$0xff]
        %v437 = vld [vmem:[#allocation2 + $0x18] sm:$0xff]
        %v438 = vadd.f32 %v434, %v435
        %v439 = vadd.f32 %v438, %v436
        %v440 = vadd.f32 %v439, %v437
        %v441 = vrot.slane %v440, 4
        %v442 = vadd.f32 %v440, %v441
        %v443 = vrot.slane %v442, 2
        %v444 = vadd.f32 %v442, %v443
        %v445 = vrot.slane %v444, 1
        %v446 = vadd.f32 %v444, %v445
        %v447 = vadd.f32 %v433, %v446
        %448 = vst [vmem:[%s359] sm:$0x1] %v447
        %s449 = sand.u32 %s159, 1
        %s450 = scalar_lea.sflag [#allocation5], %s449
        %s451 = sand.u32 %s159, 1
        %s452 = scalar_lea.vmem [#allocation11], %s451
        // Predicated region
        $region57: #{tpu_custom_call.1} parent=35 // pred_check
          %p453 = pneg %p169
        $region58: #{tpu_custom_call.1} parent=35 // pred_check_branch
          %455 = sbr.rel (%p453) target = $region60
        $region59: #{tpu_custom_call.1} parent=35 // pred_region
          %s457 = ssub.s32 16, 16
          %458 = vsyncadd %s450, %s457
          %s459 = smul.addr %s31, 16
          %s460 = scalar_lea.hbm %s4, %s459
          %s462 = sshll.u32 %s452, 4
          %s463 = int_to_ptr.vmem [resolvable:$true] %s462
          %465 = dma.vmem_to_hbm [thread:$0]  %s463, 16, %s460, %s450
        $region60: #{tpu_custom_call.1} parent=35 // pred_fallthru
          _
      $region36: #{tpu_custom_call.1} parent=5 // pred_fallthru
        _
      %p466 = scmp.le.s32.totalorder 2, %s22
      // Predicated region
      $region61: #{tpu_custom_call.1} parent=5 // pred_check
        %p467 = pneg %p466
      $region62: #{tpu_custom_call.1} parent=5 // pred_check_branch
        %469 = sbr.rel (%p467) target = $region64
      $region63: #{tpu_custom_call.1} parent=5 // pred_region
        %s470 = ssub.s32 %s22, 2
        // Predicated region
        $region65: #{tpu_custom_call.1} parent=63 // pred_check
          %p471 = pneg %p175
        $region66: #{tpu_custom_call.1} parent=63 // pred_check_branch
          %473 = sbr.rel (%p471) target = $region68
        $region67: #{tpu_custom_call.1} parent=63 // pred_region
          %s474 = sand.u32 %s160, 1
          %s475 = scalar_lea.sflag [#allocation5], %s474
          %s476 = sand.u32 %s160, 1
          %s477 = scalar_lea.vmem [#allocation11], %s476
          %478 = dma.done %s475, 16
        $region68: #{tpu_custom_call.1} parent=63 // pred_fallthru
          _
      $region64: #{tpu_custom_call.1} parent=5 // pred_fallthru
        _
    $region6: #{tpu_custom_call.1} parent=1 // loop_footer
      %s26 = sadd.s32 1, %s22
    $region7: #{tpu_custom_call.1} parent=1 // loop_footer_branch
      %21 = sbr.rel target = $region3
    $region8: #{tpu_custom_call.1} parent=1 // loop_exit
      _
    %479 = vsyncpa [#allocation4], 1
    %s480 = scalar_lea.sflag [#allocation4], 1
    %481 = vsyncpa %s480, 1
    %482 = vsyncpa [#allocation7], 1
    %s483 = scalar_lea.sflag [#allocation7], 1
    %484 = vsyncpa %s483, 1
    %485 = vsyncpa [#allocation10], 1
    %s486 = scalar_lea.sflag [#allocation10], 1
    %487 = vsyncpa %s486, 1
    %488 = vsyncpa [#allocation5], 1
    %s489 = scalar_lea.sflag [#allocation5], 1
    %490 = vsyncpa %s489, 1

</llo_original>
